<compile_context>
chip_gen: v7x
topology: tpu7x:2x2x1
jax: 0.10.0
libtpu: 0.0.40
codegen_flags: <defaults>
</compile_context>

<pallas_src>
import functools

import jax
import jax.numpy as jnp
from jax.experimental import pallas as pl
from jax.experimental.pallas import tpu as pltpu


def _round_up(x, m):
    return ((x + m - 1) // m) * m


def _pad_to(a, shape):
    pads = [(0, t - s) for s, t in zip(a.shape, shape)]
    if all(p == (0, 0) for p in pads):
        return a
    return jnp.pad(a, pads)


def _mlp_kernel(x_ref, w1_ref, b1_ref, w2_ref, b2_ref, w3_ref, b3_ref, o_ref):
    # Layer 1: (TB, IN) @ (IN, Hp) -> f32 accumulate; bias + ReLU in f32 (VPU).
    h1 = jnp.dot(x_ref[...], w1_ref[...], preferred_element_type=jnp.float32)
    h1 = jnp.maximum(h1 + b1_ref[...], 0.0)
    # Layer 2: (TB, Hp) @ (Hp, Hp); feed the MXU in the weight dtype (bf16 fast
    # path on v6e/v7x), keep accumulation + elementwise math in f32.
    h2 = jnp.dot(h1.astype(w2_ref.dtype), w2_ref[...],
                 preferred_element_type=jnp.float32)
    h2 = jnp.maximum(h2 + b2_ref[...], 0.0)
    # Layer 3: (TB, Hp) @ (Hp, OUT) with OUT unpadded -> masked store of a
    # narrow (TB, OUT) tile; trades lane-dense vst for ~42x less HBM traffic.
    z = jnp.dot(h2.astype(w3_ref.dtype), w3_ref[...],
                preferred_element_type=jnp.float32)
    o_ref[...] = (z + b3_ref[...]).astype(o_ref.dtype)


def prepare_params(params, compute_dtype=jnp.bfloat16):
    """One-time pad + cast of the parameter pytree (call OUTSIDE the hot path).

    Hidden dim is zero-padded to a multiple of 128 lanes (semantics-preserving:
    zero weights + zero bias -> ReLU(0)=0 contributes nothing downstream).
    The output feature dim is left unpadded so the kernel stores it directly.
    Biases stay f32 (VPU math stays f32); matmul weights go to compute_dtype.
    """
    w1, b1 = params["w1"], params["b1"]
    w2, b2 = params["w2"], params["b2"]
    w3, b3 = params["w3"], params["b3"]
    in_features, hidden = w1.shape
    out_features = w3.shape[1]
    hp = _round_up(hidden, 128)
    return {
        "w1": _pad_to(w1, (in_features, hp)).astype(compute_dtype),
        "b1": _pad_to(b1, (1, hp)).astype(jnp.float32),
        "w2": _pad_to(w2, (hp, hp)).astype(compute_dtype),
        "b2": _pad_to(b2, (1, hp)).astype(jnp.float32),
        "w3": _pad_to(w3, (hp, out_features)).astype(compute_dtype),
        "b3": b3.astype(jnp.float32),
    }


def _choose_batch_tile(B, block_b, min_grid):
    """Pick TB = multiple of 8 dividing round_up(B, 8), <= block_b, preferring
    a grid of at least `min_grid` steps (megacore sharding on v7x)."""
    b8 = _round_up(B, 8)
    best = 8
    t = 8
    limit = min(block_b, b8)
    while t <= limit:
        if b8 % t == 0 and (b8 // t) >= min_grid:
            best = t
        t += 8
    return b8, best


@functools.partial(jax.jit, static_argnames=("block_b", "min_grid"))
def classification_model_forward(x, prepared, *, block_b=512, min_grid=2):
    """Fused 3-layer MLP forward.

    x:        (B, in_features) float32
    prepared: output of prepare_params() (padded, pre-cast weights/biases).
    """
    w1, b1 = prepared["w1"], prepared["b1"]
    w2, b2 = prepared["w2"], prepared["b2"]
    w3, b3 = prepared["w3"], prepared["b3"]

    B, IN = x.shape
    Hp = w1.shape[1]
    OUT = w3.shape[1]
    compute_dtype = w1.dtype
    itemsize = jnp.dtype(compute_dtype).itemsize

    Bp, TB = _choose_batch_tile(B, block_b, min_grid)
    grid = (Bp // TB,)

    # Only the activations are touched per call (tiny); weights stay untouched.
    xp = _pad_to(x, (Bp, IN)).astype(compute_dtype)

    flops = 2 * Bp * (IN * Hp + Hp * Hp + Hp * OUT)
    bytes_accessed = (
        Bp * IN * itemsize                               # x
        + (IN * Hp + Hp * Hp + Hp * OUT) * itemsize      # weights
        + (2 * Hp + OUT) * 4                             # biases (f32)
        + Bp * OUT * 4                                   # output (f32)
    )
    cost = pl.CostEstimate(flops=flops, transcendentals=0,
                           bytes_accessed=bytes_accessed)

    # VMEM footprint estimate: double-buffered x/out tiles + (double-buffered)
    # resident weights/biases + f32 intermediates. Only raise the scoped limit
    # when the default (16/32 MiB) would be tight, and leave v7x headroom.
    est_vmem = (2 * TB * IN * itemsize
                + 2 * TB * OUT * 4
                + 2 * (IN * Hp + Hp * Hp + Hp * OUT) * itemsize
                + 2 * (2 * Hp + OUT) * 4
                + 3 * TB * Hp * 4)
    vmem_limit = None
    if est_vmem > 12 * (1 << 20):
        vmem_limit = min(int(est_vmem * 2), 96 * (1 << 20))

    out = pl.pallas_call(
        _mlp_kernel,
        out_shape=jax.ShapeDtypeStruct((Bp, OUT), x.dtype),
        grid=grid,
        in_specs=[
            pl.BlockSpec((TB, IN), lambda i: (i, 0)),   # x: streamed per step
            pl.BlockSpec((IN, Hp), lambda i: (0, 0)),   # weights/biases are
            pl.BlockSpec((1, Hp), lambda i: (0, 0)),    # VMEM-resident
            pl.BlockSpec((Hp, Hp), lambda i: (0, 0)),
            pl.BlockSpec((1, Hp), lambda i: (0, 0)),
            pl.BlockSpec((Hp, OUT), lambda i: (0, 0)),  # OUT kept unpadded
            pl.BlockSpec((1, OUT), lambda i: (0, 0)),
        ],
        out_specs=pl.BlockSpec((TB, OUT), lambda i: (i, 0)),
        compiler_params=pltpu.CompilerParams(
            dimension_semantics=("parallel",),   # megacore-shardable batch axis
            vmem_limit_bytes=vmem_limit,
        ),
        cost_estimate=cost,
    )(xp, w1, b1, w2, b2, w3, b3)

    if Bp != B:
        out = out[:B]
    return out


def init_params(key, in_features, out_features, hidden_units, dtype=jnp.float32):
    """Mimics nn.Linear's uniform(-1/sqrt(fan_in), 1/sqrt(fan_in)) init."""
    ks = jax.random.split(key, 6)

    def linear(kw, kb, fan_in, fan_out):
        bound = 1.0 / jnp.sqrt(fan_in)
        w = jax.random.uniform(kw, (fan_in, fan_out), dtype, -bound, bound)
        b = jax.random.uniform(kb, (1, fan_out), dtype, -bound, bound)
        return w, b

    w1, b1 = linear(ks[0], ks[1], in_features, hidden_units)
    w2, b2 = linear(ks[2], ks[3], hidden_units, hidden_units)
    w3, b3 = linear(ks[4], ks[5], hidden_units, out_features)
    return {"w1": w1, "b1": b1, "w2": w2, "b2": b2, "w3": w3, "b3": b3}


def reference_forward(x, p):
    h1 = jnp.maximum(x @ p["w1"] + p["b1"], 0.0)
    h2 = jnp.maximum(h1 @ p["w2"] + p["b2"], 0.0)
    return h2 @ p["w3"] + p["b3"]


if __name__ == "__main__":
    key = jax.random.PRNGKey(0)
    k_x, k_p = jax.random.split(key)

    # Module-consistent sizes; batch exercises the batch tiling (grid of 2
    # steps at TB=256 -> both v7x TensorCores used) while staying small.
    batch, in_features, hidden_units, out_features = 512, 4, 32, 3
    x = jax.random.normal(k_x, (batch, in_features), jnp.float32)
    params = init_params(k_p, in_features, out_features, hidden_units)

    ref = reference_forward(x, params)

    # Exact-precision path (f32 matmul operands): must match reference tightly.
    prepared_f32 = prepare_params(params, compute_dtype=jnp.float32)
    out_f32 = classification_model_forward(x, prepared_f32)
    out_f32 = jax.block_until_ready(out_f32)
    assert out_f32.shape == (batch, out_features)
    assert jnp.allclose(out_f32, ref, atol=1e-5, rtol=1e-5), "f32 mismatch vs reference"

    # Fast path (bf16 matmul operands, f32 accumulate) -> looser tolerance.
    prepared_bf16 = prepare_params(params, compute_dtype=jnp.bfloat16)
    out_bf16 = classification_model_forward(x, prepared_bf16)
    out_bf16 = jax.block_until_ready(out_bf16)
    assert out_bf16.shape == (batch, out_features)
    assert jnp.max(jnp.abs(out_bf16 - ref)) < 1e-1, "bf16 mismatch vs reference"

    print("KERNEL_OK")
</pallas_src>

<mosaic_0001>
module attributes {stable_mosaic.version = 11 : i64} {
  func.func @_mlp_kernel(%arg0: i32, %arg1: memref<256x4xf32, #tpu.memory_space<vmem>>, %arg2: memref<4x128xf32, #tpu.memory_space<vmem>>, %arg3: memref<1x128xf32, #tpu.memory_space<vmem>>, %arg4: memref<128x128xf32, #tpu.memory_space<vmem>>, %arg5: memref<1x128xf32, #tpu.memory_space<vmem>>, %arg6: memref<128x3xf32, #tpu.memory_space<vmem>>, %arg7: memref<1x3xf32, #tpu.memory_space<vmem>>, %arg8: memref<256x3xf32, #tpu.memory_space<vmem>>) attributes {dimension_semantics = [#tpu.dimension_semantics<parallel>], iteration_bounds = array<i64: 2>, scalar_prefetch = 0 : i64, scratch_operands = 0 : i64, tpu.core_type = #tpu.core_type<tc>, window_params = [{transform_indices = @transform_0, window_bounds = array<i64: 256, 4>}, {pipeline_mode = #tpu.pipeline_mode<synchronous>, transform_indices = @transform_1, window_bounds = array<i64: 4, 128>}, {pipeline_mode = #tpu.pipeline_mode<synchronous>, transform_indices = @transform_2, window_bounds = array<i64: 1, 128>}, {pipeline_mode = #tpu.pipeline_mode<synchronous>, transform_indices = @transform_3, window_bounds = array<i64: 128, 128>}, {pipeline_mode = #tpu.pipeline_mode<synchronous>, transform_indices = @transform_4, window_bounds = array<i64: 1, 128>}, {pipeline_mode = #tpu.pipeline_mode<synchronous>, transform_indices = @transform_5, window_bounds = array<i64: 128, 3>}, {pipeline_mode = #tpu.pipeline_mode<synchronous>, transform_indices = @transform_6, window_bounds = array<i64: 1, 3>}, {transform_indices = @transform_7, window_bounds = array<i64: 256, 3>}]} {
    %c0 = arith.constant 0 : index
    %c0_0 = arith.constant 0 : index
    %0 = vector.load %arg1[%c0, %c0_0] : memref<256x4xf32, #tpu.memory_space<vmem>>, vector<256x4xf32>
    %c0_1 = arith.constant 0 : index
    %c0_2 = arith.constant 0 : index
    %1 = vector.load %arg2[%c0_1, %c0_2] : memref<4x128xf32, #tpu.memory_space<vmem>>, vector<4x128xf32>
    %cst = arith.constant dense<0.000000e+00> : vector<256x128xf32>
    %2 = tpu.matmul %0, %1, %cst {dimension_numbers = #tpu.dot_dimension_numbers<[1], [0], [0], [1], [0, 0, 1, 1], [], []>} : vector<256x4xf32>, vector<4x128xf32>, vector<256x128xf32> -> vector<256x128xf32>
    %c0_3 = arith.constant 0 : index
    %c0_4 = arith.constant 0 : index
    %3 = vector.load %arg3[%c0_3, %c0_4] : memref<1x128xf32, #tpu.memory_space<vmem>>, vector<1x128xf32>
    %4 = vector.broadcast %3 : vector<1x128xf32> to vector<256x128xf32>
    %5 = arith.addf %2, %4 : vector<256x128xf32>
    %cst_5 = arith.constant 0.000000e+00 : f32
    %6 = vector.broadcast %cst_5 : f32 to vector<256x128xf32>
    %7 = arith.maximumf %5, %6 : vector<256x128xf32>
    %c0_6 = arith.constant 0 : index
    %c0_7 = arith.constant 0 : index
    %8 = vector.load %arg4[%c0_6, %c0_7] : memref<128x128xf32, #tpu.memory_space<vmem>>, vector<128x128xf32>
    %cst_8 = arith.constant dense<0.000000e+00> : vector<256x128xf32>
    %9 = tpu.matmul %7, %8, %cst_8 {dimension_numbers = #tpu.dot_dimension_numbers<[1], [0], [0], [1], [0, 0, 1, 1], [], []>} : vector<256x128xf32>, vector<128x128xf32>, vector<256x128xf32> -> vector<256x128xf32>
    %c0_9 = arith.constant 0 : index
    %c0_10 = arith.constant 0 : index
    %10 = vector.load %arg5[%c0_9, %c0_10] : memref<1x128xf32, #tpu.memory_space<vmem>>, vector<1x128xf32>
    %11 = vector.broadcast %10 : vector<1x128xf32> to vector<256x128xf32>
    %12 = arith.addf %9, %11 : vector<256x128xf32>
    %cst_11 = arith.constant 0.000000e+00 : f32
    %13 = vector.broadcast %cst_11 : f32 to vector<256x128xf32>
    %14 = arith.maximumf %12, %13 : vector<256x128xf32>
    %c0_12 = arith.constant 0 : index
    %c0_13 = arith.constant 0 : index
    %15 = vector.load %arg6[%c0_12, %c0_13] : memref<128x3xf32, #tpu.memory_space<vmem>>, vector<128x3xf32>
    %cst_14 = arith.constant dense<0.000000e+00> : vector<256x3xf32>
    %16 = tpu.matmul %14, %15, %cst_14 {dimension_numbers = #tpu.dot_dimension_numbers<[1], [0], [0], [1], [0, 0, 1, 1], [], []>} : vector<256x128xf32>, vector<128x3xf32>, vector<256x3xf32> -> vector<256x3xf32>
    %c0_15 = arith.constant 0 : index
    %c0_16 = arith.constant 0 : index
    %17 = vector.load %arg7[%c0_15, %c0_16] : memref<1x3xf32, #tpu.memory_space<vmem>>, vector<1x3xf32>
    %18 = vector.broadcast %17 : vector<1x3xf32> to vector<256x3xf32>
    %19 = arith.addf %16, %18 : vector<256x3xf32>
    %c0_17 = arith.constant 0 : index
    %c0_18 = arith.constant 0 : index
    %20 = vector.load %arg8[%c0_17, %c0_18] : memref<256x3xf32, #tpu.memory_space<vmem>>, vector<256x3xf32>
    tpu.vector_store %arg8[%c0_17, %c0_18], %19 {strides = array<i32>} : memref<256x3xf32, #tpu.memory_space<vmem>>, vector<256x3xf32>,
    return
  }
  func.func @transform_0(%arg0: i32) -> (i32, i32) {
    %c0_i32 = arith.constant 0 : i32
    %c0_i32_0 = arith.constant 0 : i32
    return %arg0, %c0_i32 : i32, i32
  }
  func.func @transform_1(%arg0: i32) -> (i32, i32) {
    %c0_i32 = arith.constant 0 : i32
    %c0_i32_0 = arith.constant 0 : i32
    %c0_i32_1 = arith.constant 0 : i32
    return %c0_i32, %c0_i32_0 : i32, i32
  }
  func.func @transform_2(%arg0: i32) -> (i32, i32) {
    %c0_i32 = arith.constant 0 : i32
    %c0_i32_0 = arith.constant 0 : i32
    %c0_i32_1 = arith.constant 0 : i32
    return %c0_i32, %c0_i32_0 : i32, i32
  }
  func.func @transform_3(%arg0: i32) -> (i32, i32) {
    %c0_i32 = arith.constant 0 : i32
    %c0_i32_0 = arith.constant 0 : i32
    %c0_i32_1 = arith.constant 0 : i32
    return %c0_i32, %c0_i32_0 : i32, i32
  }
  func.func @transform_4(%arg0: i32) -> (i32, i32) {
    %c0_i32 = arith.constant 0 : i32
    %c0_i32_0 = arith.constant 0 : i32
    %c0_i32_1 = arith.constant 0 : i32
    return %c0_i32, %c0_i32_0 : i32, i32
  }
  func.func @transform_5(%arg0: i32) -> (i32, i32) {
    %c0_i32 = arith.constant 0 : i32
    %c0_i32_0 = arith.constant 0 : i32
    %c0_i32_1 = arith.constant 0 : i32
    return %c0_i32, %c0_i32_0 : i32, i32
  }
  func.func @transform_6(%arg0: i32) -> (i32, i32) {
    %c0_i32 = arith.constant 0 : i32
    %c0_i32_0 = arith.constant 0 : i32
    %c0_i32_1 = arith.constant 0 : i32
    return %c0_i32, %c0_i32_0 : i32, i32
  }
  func.func @transform_7(%arg0: i32) -> (i32, i32) {
    %c0_i32 = arith.constant 0 : i32
    %c0_i32_0 = arith.constant 0 : i32
    return %arg0, %c0_i32 : i32, i32
  }
}

</mosaic_0001>

<llo_original>
// kernel: classification_model_forward.1
$region0: #{classification_model_forward.1}
  #allocation0 [shape = 'u32[]', space=smem, size = 0x4, offset = 0x4, fixed_abs, tag = 'smem constant byte address 0x4 - core index']
  #allocation1 [shape = 'u32[144,128]{1,0:T(1,128)}', space=vmem, size = 0x12000, scoped, tag = 'internal scratch']
  %s0 = inlined_call_operand.vmem [shape: f32[512,4], index: 0, kind: input, shape index: {}]
  %s1 = inlined_call_operand.vmem [shape: f32[4,128], index: 1, kind: input, shape index: {}]
  %s2 = inlined_call_operand.vmem [shape: f32[1,128], index: 2, kind: input, shape index: {}]
  %s3 = inlined_call_operand.vmem [shape: f32[128,128], index: 3, kind: input, shape index: {}]
  %s4 = inlined_call_operand.vmem [shape: f32[1,128], index: 4, kind: input, shape index: {}]
  %s5 = inlined_call_operand.vmem [shape: f32[128,3], index: 5, kind: input, shape index: {}]
  %s6 = inlined_call_operand.vmem [shape: f32[1,3], index: 6, kind: input, shape index: {}]
  %s7 = inlined_call_operand.vmem [shape: f32[512,3], index: 7, kind: output, shape index: {}]
  %s8 = sld [smem:[#allocation0]]
  $region61: #{classification_model_forward.1} parent=0
    _
  %s10 = ssub.s32 1, %s8
  %s11 = scalar_select 0, %s10, %s8
  loop: start=0, step=1, limit=4
  $region2: #{classification_model_forward.1} parent=0 // loop_pre_header
    _
  $region3: #{classification_model_forward.1} parent=0 // loop_header
    %s13 = sphi 0, %s17
    %p14 = scmp.ge.s32.totalorder %s13, 4
    %s23 = sphi 0, %s25
    %s26 = sphi 0, %s23
    %s27 = sphi 0, %s26
    %s43 = sphi 0, %s27
    %s47 = sphi 0, %s47
    %s49 = sphi 0, %s47
    %s50 = sphi 0, %s49
    %s64 = sphi 0, %s50
    %s68 = sphi 0, %s68
    %s70 = sphi 0, %s68
    %s71 = sphi 0, %s70
    %s85 = sphi 0, %s71
    %s89 = sphi 0, %s89
    %s91 = sphi 0, %s89
    %s92 = sphi 0, %s91
    %s106 = sphi 0, %s92
    %s110 = sphi 0, %s110
    %s112 = sphi 0, %s110
    %s113 = sphi 0, %s112
    %s127 = sphi 0, %s113
    %s131 = sphi 0, %s131
    %s133 = sphi 0, %s131
    %s134 = sphi 0, %s133
    %s148 = sphi 0, %s134
    %s152 = sphi 0, %s152
    %s154 = sphi 0, %s152
    %s155 = sphi 0, %s154
    %s169 = sphi 0, %s155
    %s175 = sphi 0, %s177
    %s178 = sphi 0, %s175
    %s179 = sphi 0, %s178
    %s195 = sphi 0, %s179
  $region4: #{classification_model_forward.1} parent=0 // loop_header_branch
    %16 = sbr.rel (%p14) target = $region8
  $region5: #{classification_model_forward.1} parent=0 // loop_body
    %s18 = ssub.s32 %s13, 1
    %s19 = ssub.s32 %s13, 2
    %s20 = sadd.s32 %s13, 1
    %s21 = ssub.s32 %s13, %s20
    %p22 = scmp.eq.s32.totalorder %s21, 0
    %s24 = sadd.s32 %s23, 1
    %s25 = scalar_select %p22, %s23, %s24
    %p28 = pneg %p22
    %p29 = scmp.eq.s32.totalorder %s13, 1
    %p30 = por %p28, %p29
    %p31 = scmp.ne.s32.totalorder %s23, %s26
    %p32 = scmp.eq.s32.totalorder %s13, 0
    %p33 = por %p31, %p32
    %p34 = scmp.ne.s32.totalorder %s23, %s26
    %p35 = scmp.eq.s32.totalorder %s18, 1
    %p36 = por %p34, %p35
    %p37 = scmp.ne.s32.totalorder %s26, %s27
    %p38 = scmp.eq.s32.totalorder %s18, 0
    %p39 = por %p37, %p38
    %p40 = scmp.ne.s32.totalorder %s26, %s27
    %p41 = scmp.eq.s32.totalorder %s19, 1
    %p42 = por %p40, %p41
    %p44 = scmp.ne.s32.totalorder %s27, %s43
    %p45 = scmp.eq.s32.totalorder %s19, 0
    %p46 = por %p44, %p45
    %s48 = sadd.s32 %s47, 1
    %p51 = scmp.eq.s32.totalorder %s13, 1
    %p52 = scmp.ne.s32.totalorder %s47, %s49
    %p53 = scmp.eq.s32.totalorder %s13, 0
    %p54 = por %p52, %p53
    %p55 = scmp.ne.s32.totalorder %s47, %s49
    %p56 = scmp.eq.s32.totalorder %s18, 1
    %p57 = por %p55, %p56
    %p58 = scmp.ne.s32.totalorder %s49, %s50
    %p59 = scmp.eq.s32.totalorder %s18, 0
    %p60 = por %p58, %p59
    %p61 = scmp.ne.s32.totalorder %s49, %s50
    %p62 = scmp.eq.s32.totalorder %s19, 1
    %p63 = por %p61, %p62
    %p65 = scmp.ne.s32.totalorder %s50, %s64
    %p66 = scmp.eq.s32.totalorder %s19, 0
    %p67 = por %p65, %p66
    %s69 = sadd.s32 %s68, 1
    %p72 = scmp.eq.s32.totalorder %s13, 1
    %p73 = scmp.ne.s32.totalorder %s68, %s70
    %p74 = scmp.eq.s32.totalorder %s13, 0
    %p75 = por %p73, %p74
    %p76 = scmp.ne.s32.totalorder %s68, %s70
    %p77 = scmp.eq.s32.totalorder %s18, 1
    %p78 = por %p76, %p77
    %p79 = scmp.ne.s32.totalorder %s70, %s71
    %p80 = scmp.eq.s32.totalorder %s18, 0
    %p81 = por %p79, %p80
    %p82 = scmp.ne.s32.totalorder %s70, %s71
    %p83 = scmp.eq.s32.totalorder %s19, 1
    %p84 = por %p82, %p83
    %p86 = scmp.ne.s32.totalorder %s71, %s85
    %p87 = scmp.eq.s32.totalorder %s19, 0
    %p88 = por %p86, %p87
    %s90 = sadd.s32 %s89, 1
    %p93 = scmp.eq.s32.totalorder %s13, 1
    %p94 = scmp.ne.s32.totalorder %s89, %s91
    %p95 = scmp.eq.s32.totalorder %s13, 0
    %p96 = por %p94, %p95
    %p97 = scmp.ne.s32.totalorder %s89, %s91
    %p98 = scmp.eq.s32.totalorder %s18, 1
    %p99 = por %p97, %p98
    %p100 = scmp.ne.s32.totalorder %s91, %s92
    %p101 = scmp.eq.s32.totalorder %s18, 0
    %p102 = por %p100, %p101
    %p103 = scmp.ne.s32.totalorder %s91, %s92
    %p104 = scmp.eq.s32.totalorder %s19, 1
    %p105 = por %p103, %p104
    %p107 = scmp.ne.s32.totalorder %s92, %s106
    %p108 = scmp.eq.s32.totalorder %s19, 0
    %p109 = por %p107, %p108
    %s111 = sadd.s32 %s110, 1
    %p114 = scmp.eq.s32.totalorder %s13, 1
    %p115 = scmp.ne.s32.totalorder %s110, %s112
    %p116 = scmp.eq.s32.totalorder %s13, 0
    %p117 = por %p115, %p116
    %p118 = scmp.ne.s32.totalorder %s110, %s112
    %p119 = scmp.eq.s32.totalorder %s18, 1
    %p120 = por %p118, %p119
    %p121 = scmp.ne.s32.totalorder %s112, %s113
    %p122 = scmp.eq.s32.totalorder %s18, 0
    %p123 = por %p121, %p122
    %p124 = scmp.ne.s32.totalorder %s112, %s113
    %p125 = scmp.eq.s32.totalorder %s19, 1
    %p126 = por %p124, %p125
    %p128 = scmp.ne.s32.totalorder %s113, %s127
    %p129 = scmp.eq.s32.totalorder %s19, 0
    %p130 = por %p128, %p129
    %s132 = sadd.s32 %s131, 1
    %p135 = scmp.eq.s32.totalorder %s13, 1
    %p136 = scmp.ne.s32.totalorder %s131, %s133
    %p137 = scmp.eq.s32.totalorder %s13, 0
    %p138 = por %p136, %p137
    %p139 = scmp.ne.s32.totalorder %s131, %s133
    %p140 = scmp.eq.s32.totalorder %s18, 1
    %p141 = por %p139, %p140
    %p142 = scmp.ne.s32.totalorder %s133, %s134
    %p143 = scmp.eq.s32.totalorder %s18, 0
    %p144 = por %p142, %p143
    %p145 = scmp.ne.s32.totalorder %s133, %s134
    %p146 = scmp.eq.s32.totalorder %s19, 1
    %p147 = por %p145, %p146
    %p149 = scmp.ne.s32.totalorder %s134, %s148
    %p150 = scmp.eq.s32.totalorder %s19, 0
    %p151 = por %p149, %p150
    %s153 = sadd.s32 %s152, 1
    %p156 = scmp.eq.s32.totalorder %s13, 1
    %p157 = scmp.ne.s32.totalorder %s152, %s154
    %p158 = scmp.eq.s32.totalorder %s13, 0
    %p159 = por %p157, %p158
    %p160 = scmp.ne.s32.totalorder %s152, %s154
    %p161 = scmp.eq.s32.totalorder %s18, 1
    %p162 = por %p160, %p161
    %p163 = scmp.ne.s32.totalorder %s154, %s155
    %p164 = scmp.eq.s32.totalorder %s18, 0
    %p165 = por %p163, %p164
    %p166 = scmp.ne.s32.totalorder %s154, %s155
    %p167 = scmp.eq.s32.totalorder %s19, 1
    %p168 = por %p166, %p167
    %p170 = scmp.ne.s32.totalorder %s155, %s169
    %p171 = scmp.eq.s32.totalorder %s19, 0
    %p172 = por %p170, %p171
    %s173 = ssub.s32 %s13, %s20
    %p174 = scmp.eq.s32.totalorder %s173, 0
    %s176 = sadd.s32 %s175, 1
    %s177 = scalar_select %p174, %s175, %s176
    %p180 = pneg %p174
    %p181 = scmp.eq.s32.totalorder %s13, 1
    %p182 = por %p180, %p181
    %p183 = scmp.ne.s32.totalorder %s175, %s178
    %p184 = scmp.eq.s32.totalorder %s13, 0
    %p185 = por %p183, %p184
    %p186 = scmp.ne.s32.totalorder %s175, %s178
    %p187 = scmp.eq.s32.totalorder %s18, 1
    %p188 = por %p186, %p187
    %p189 = scmp.ne.s32.totalorder %s178, %s179
    %p190 = scmp.eq.s32.totalorder %s18, 0
    %p191 = por %p189, %p190
    %p192 = scmp.ne.s32.totalorder %s178, %s179
    %p193 = scmp.eq.s32.totalorder %s19, 1
    %p194 = por %p192, %p193
    %p196 = scmp.ne.s32.totalorder %s179, %s195
    %p197 = scmp.eq.s32.totalorder %s19, 0
    %p198 = por %p196, %p197
    %p199 = scmp.le.s32.totalorder 1, %s13
    %p200 = scmp.lt.s32.totalorder %s13, 3
    %p201 = pnand %p199, %p200
    %p202 = pneg %p201
    // Predicated region
    $region9: #{classification_model_forward.1} parent=5 // pred_check
      _
    $region10: #{classification_model_forward.1} parent=5 // pred_check_branch
      %204 = sbr.rel (%p201) target = $region12
    $region11: #{classification_model_forward.1} parent=5 // pred_region
      %s205 = ssub.s32 %s13, 1
      // Predicated region
      $region13: #{classification_model_forward.1} parent=11 // pred_check
        %p206 = pneg %p60
      $region14: #{classification_model_forward.1} parent=11 // pred_check_branch
        %208 = sbr.rel (%p206) target = $region16
      $region15: #{classification_model_forward.1} parent=11 // pred_region
        _
      $region16: #{classification_model_forward.1} parent=11 // pred_fallthru
        _
      // Predicated region
      $region17: #{classification_model_forward.1} parent=11 // pred_check
        %p209 = pneg %p81
      $region18: #{classification_model_forward.1} parent=11 // pred_check_branch
        %211 = sbr.rel (%p209) target = $region20
      $region19: #{classification_model_forward.1} parent=11 // pred_region
        _
      $region20: #{classification_model_forward.1} parent=11 // pred_fallthru
        _
      // Predicated region
      $region21: #{classification_model_forward.1} parent=11 // pred_check
        %p212 = pneg %p102
      $region22: #{classification_model_forward.1} parent=11 // pred_check_branch
        %214 = sbr.rel (%p212) target = $region24
      $region23: #{classification_model_forward.1} parent=11 // pred_region
        _
      $region24: #{classification_model_forward.1} parent=11 // pred_fallthru
        _
      // Predicated region
      $region25: #{classification_model_forward.1} parent=11 // pred_check
        %p215 = pneg %p123
      $region26: #{classification_model_forward.1} parent=11 // pred_check_branch
        %217 = sbr.rel (%p215) target = $region28
      $region27: #{classification_model_forward.1} parent=11 // pred_region
        _
      $region28: #{classification_model_forward.1} parent=11 // pred_fallthru
        _
      // Predicated region
      $region29: #{classification_model_forward.1} parent=11 // pred_check
        %p218 = pneg %p144
      $region30: #{classification_model_forward.1} parent=11 // pred_check_branch
        %220 = sbr.rel (%p218) target = $region32
      $region31: #{classification_model_forward.1} parent=11 // pred_region
        _
      $region32: #{classification_model_forward.1} parent=11 // pred_fallthru
        _
      // Predicated region
      $region33: #{classification_model_forward.1} parent=11 // pred_check
        %p221 = pneg %p165
      $region34: #{classification_model_forward.1} parent=11 // pred_check_branch
        %223 = sbr.rel (%p221) target = $region36
      $region35: #{classification_model_forward.1} parent=11 // pred_region
        _
      $region36: #{classification_model_forward.1} parent=11 // pred_fallthru
        _
    $region12: #{classification_model_forward.1} parent=5 // pred_fallthru
      _
    %p224 = scmp.lt.s32.totalorder %s13, 2
    // Predicated region
    $region37: #{classification_model_forward.1} parent=5 // pred_check
      %p225 = pneg %p224
    $region38: #{classification_model_forward.1} parent=5 // pred_check_branch
      %227 = sbr.rel (%p225) target = $region40
    $region39: #{classification_model_forward.1} parent=5 // pred_region
      // Predicated region
      $region41: #{classification_model_forward.1} parent=39 // pred_check
        %p228 = pneg %p33
      $region42: #{classification_model_forward.1} parent=39 // pred_check_branch
        %230 = sbr.rel (%p228) target = $region44
      $region43: #{classification_model_forward.1} parent=39 // pred_region
        %s231 = smul.u32 32, %s13
        %p232 = scmp.lt.s32.totalorder %s231, 63
        %s233 = scalar_select %p232, %s231, 63
        %s234 = smul.addr %s233, 8
        %s235 = scalar_lea.vmem %s0, %s234
        %s236 = smul.u32 32, %s13
      $region44: #{classification_model_forward.1} parent=39 // pred_fallthru
        _
    $region40: #{classification_model_forward.1} parent=5 // pred_fallthru
      _
    %p237 = scmp.le.s32.totalorder 1, %s13
    %p238 = scmp.lt.s32.totalorder %s13, 3
    %p239 = pnand %p237, %p238
    %p240 = pneg %p239
    // Predicated region
    $region45: #{classification_model_forward.1} parent=5 // pred_check
      _
    $region46: #{classification_model_forward.1} parent=5 // pred_check_branch
      %242 = sbr.rel (%p239) target = $region48
    $region47: #{classification_model_forward.1} parent=5 // pred_region
      %s243 = ssub.s32 %s13, 1
      %s244 = smul.u32 32, %s18
      %p245 = scmp.lt.s32.totalorder %s244, 63
      %s246 = scalar_select %p245, %s244, 63
      %s247 = smul.addr %s246, 8
      %s248 = scalar_lea.vmem %s0, %s247
      %p249 = pneg %p39
      %p250 = pneg %p36
      %p251 = pneg %p60
      %p252 = pneg %p57
      %p253 = pneg %p81
      %p254 = pneg %p78
      %p255 = pneg %p102
      %p256 = pneg %p99
      %p257 = pneg %p123
      %p258 = pneg %p120
      %p259 = pneg %p144
      %p260 = pneg %p141
      %p261 = pneg %p165
      %p262 = pneg %p162
      %p263 = pneg %p191
      %p264 = pneg %p188
      %s265 = smul.u32 32, %s18
      %p266 = scmp.lt.s32.totalorder %s265, 63
      %s267 = scalar_select %p266, %s265, 63
      %s268 = smul.addr %s267, 8
      %s269 = scalar_lea.vmem %s7, %s268
      %s270 = smul.u32 32, %s18
      %p271 = scmp.lt.s32.totalorder %s270, 63
      %s272 = scalar_select %p271, %s270, 63
      %s273 = smul.addr %s272, 8
      %s274 = scalar_lea.vmem %s0, %s273
      %s275 = smul.u32 32, %s18
      %s276 = smul.u32 32, %s18
      %p277 = scmp.lt.s32.totalorder %s276, 63
      %s278 = scalar_select %p277, %s276, 63
      %s279 = smul.addr %s278, 8
      %s280 = scalar_lea.vmem %s7, %s279
      %s281 = smul.u32 32, %s18
      %v282 = vld [vmem:[%s274] sm:$0xff]
      %v283 = vld [vmem:[%s274 + $0x8] sm:$0xff]
      %v284 = vld [vmem:[%s274 + $0x10] sm:$0xff]
      %v285 = vld [vmem:[%s274 + $0x18] sm:$0xff]
      %v286 = vld [vmem:[%s274 + $0x20] sm:$0xff]
      %v287 = vld [vmem:[%s274 + $0x28] sm:$0xff]
      %v288 = vld [vmem:[%s274 + $0x30] sm:$0xff]
      %v289 = vld [vmem:[%s274 + $0x38] sm:$0xff]
      %v290 = vld [vmem:[%s274 + $0x40] sm:$0xff]
      %v291 = vld [vmem:[%s274 + $0x48] sm:$0xff]
      %v292 = vld [vmem:[%s274 + $0x50] sm:$0xff]
      %v293 = vld [vmem:[%s274 + $0x58] sm:$0xff]
      %v294 = vld [vmem:[%s274 + $0x60] sm:$0xff]
      %v295 = vld [vmem:[%s274 + $0x68] sm:$0xff]
      %v296 = vld [vmem:[%s274 + $0x70] sm:$0xff]
      %v297 = vld [vmem:[%s274 + $0x78] sm:$0xff]
      %v298 = vld [vmem:[%s274 + $0x80] sm:$0xff]
      %v299 = vld [vmem:[%s274 + $0x88] sm:$0xff]
      %v300 = vld [vmem:[%s274 + $0x90] sm:$0xff]
      %v301 = vld [vmem:[%s274 + $0x98] sm:$0xff]
      %v302 = vld [vmem:[%s274 + $0xa0] sm:$0xff]
      %v303 = vld [vmem:[%s274 + $0xa8] sm:$0xff]
      %v304 = vld [vmem:[%s274 + $0xb0] sm:$0xff]
      %v305 = vld [vmem:[%s274 + $0xb8] sm:$0xff]
      %v306 = vld [vmem:[%s274 + $0xc0] sm:$0xff]
      %v307 = vld [vmem:[%s274 + $0xc8] sm:$0xff]
      %v308 = vld [vmem:[%s274 + $0xd0] sm:$0xff]
      %v309 = vld [vmem:[%s274 + $0xd8] sm:$0xff]
      %v310 = vld [vmem:[%s274 + $0xe0] sm:$0xff]
      %v311 = vld [vmem:[%s274 + $0xe8] sm:$0xff]
      %v312 = vld [vmem:[%s274 + $0xf0] sm:$0xff]
      %v313 = vld [vmem:[%s274 + $0xf8] sm:$0xff]
      %v314 = vld [vmem:[%s1] sm:$0xf]
      %v315 = vld [vmem:[%s2] sm:$0x1]
      %v317 = vlaneseq
      %v318 = vshrl.u32 %v317, 7
      %v319 = vsub.s32 0, %v318
      %v320 = vrot.slane %v315, %v319
      %vm322 = vcmask 31744
      %v324 = vsel %vm322, %v282, 0
      %v327 = vsel %vm322, %v283, 0
      %v330 = vsel %vm322, %v284, 0
      %v333 = vsel %vm322, %v285, 0
      %v336 = vsel %vm322, %v286, 0
      %v339 = vsel %vm322, %v287, 0
      %v342 = vsel %vm322, %v288, 0
      %v345 = vsel %vm322, %v289, 0
      %v348 = vsel %vm322, %v290, 0
      %v351 = vsel %vm322, %v291, 0
      %v354 = vsel %vm322, %v292, 0
      %v357 = vsel %vm322, %v293, 0
      %v360 = vsel %vm322, %v294, 0
      %v363 = vsel %vm322, %v295, 0
      %v366 = vsel %vm322, %v296, 0
      %v369 = vsel %vm322, %v297, 0
      %v372 = vsel %vm322, %v298, 0
      %v375 = vsel %vm322, %v299, 0
      %v378 = vsel %vm322, %v300, 0
      %v381 = vsel %vm322, %v301, 0
      %v384 = vsel %vm322, %v302, 0
      %v387 = vsel %vm322, %v303, 0
      %v390 = vsel %vm322, %v304, 0
      %v393 = vsel %vm322, %v305, 0
      %v396 = vsel %vm322, %v306, 0
      %v399 = vsel %vm322, %v307, 0
      %v402 = vsel %vm322, %v308, 0
      %v405 = vsel %vm322, %v309, 0
      %v408 = vsel %vm322, %v310, 0
      %v411 = vsel %vm322, %v311, 0
      %v414 = vsel %vm322, %v312, 0
      %v417 = vsel %vm322, %v313, 0
      %vm419 = vcmask 1043456
      %v421 = vsel %vm419, %v314, 0
      %423 = vmatprep.subr.mxu0 0.0
      %424 = vmatpush1.msra.mxu0 %v421
      %425 = vmatprep.subr.mxu0 0.0
      %426 = vmatpush1.msra.mxu0 0.0
      %427 = vmatprep.subr.mxu0 0.0
      %428 = vmatpush1.msra.mxu0 0.0
      %429 = vmatprep.subr.mxu0 0.0
      %430 = vmatpush1.msra.mxu0 0.0
      %431 = vmatprep.subr.mxu0 0.0
      %432 = vmatpush1.msra.mxu0 0.0
      %433 = vmatprep.subr.mxu0 0.0
      %434 = vmatpush1.msra.mxu0 0.0
      %435 = vmatprep.subr.mxu0 0.0
      %436 = vmatpush1.msra.mxu0 0.0
      %437 = vmatprep.subr.mxu0 0.0
      %438 = vmatpush1.msra.mxu0 0.0
      %439 = vmatprep.subr.mxu0 0.0
      %440 = vmatpush1.msra.mxu0 0.0
      %441 = vmatprep.subr.mxu0 0.0
      %442 = vmatpush1.msra.mxu0 0.0
      %443 = vmatprep.subr.mxu0 0.0
      %444 = vmatpush1.msra.mxu0 0.0
      %445 = vmatprep.subr.mxu0 0.0
      %446 = vmatpush1.msra.mxu0 0.0
      %447 = vmatprep.subr.mxu0 0.0
      %448 = vmatpush1.msra.mxu0 0.0
      %449 = vmatprep.subr.mxu0 0.0
      %450 = vmatpush1.msra.mxu0 0.0
      %451 = vmatprep.subr.mxu0 0.0
      %452 = vmatpush1.msra.mxu0 0.0
      %453 = vmatprep.subr.mxu0 0.0
      %454 = vmatpush1.msra.mxu0 0.0
      %455 = vmatprep.subr.mxu0 0.0
      %456 = vmatpush1.msra.mxu0 0.0
      %457 = vmatprep.subr.mxu0 0.0
      %458 = vmatpush1.msra.mxu0 0.0
      %459 = vmatprep.subr.mxu0 0.0
      %460 = vmatpush1.msra.mxu0 0.0
      %461 = vmatprep.subr.mxu0 0.0
      %462 = vmatpush1.msra.mxu0 0.0
      %463 = vmatprep.subr.mxu0 0.0
      %464 = vmatpush1.msra.mxu0 0.0
      %465 = vmatprep.subr.mxu0 0.0
      %466 = vmatpush1.msra.mxu0 0.0
      %467 = vmatprep.subr.mxu0 0.0
      %468 = vmatpush1.msra.mxu0 0.0
      %469 = vmatprep.subr.mxu0 0.0
      %470 = vmatpush1.msra.mxu0 0.0
      %471 = vmatprep.subr.mxu0 0.0
      %472 = vmatpush1.msra.mxu0 0.0
      %473 = vmatprep.subr.mxu0 0.0
      %474 = vmatpush1.msra.mxu0 0.0
      %475 = vmatprep.subr.mxu0 0.0
      %476 = vmatpush1.msra.mxu0 0.0
      %477 = vmatprep.subr.mxu0 0.0
      %478 = vmatpush1.msra.mxu0 0.0
      %479 = vmatprep.subr.mxu0 0.0
      %480 = vmatpush1.msra.mxu0 0.0
      %481 = vmatprep.subr.mxu0 0.0
      %482 = vmatpush1.msra.mxu0 0.0
      %483 = vmatprep.subr.mxu0 0.0
      %484 = vmatpush1.msra.mxu0 0.0
      %485 = vmatprep.subr.mxu0 0.0
      %486 = vmatpush1.msra.mxu0 0.0
      %487 = vmatprep.mubr.f32.mxu0 0.0
      %488 = vmatmul.mubr.f32.gmra.mrb[0].mxu0 %v324
      %v489 = vpop.f32.mrb[0].mxu0
      %v490 = vadd.f32 %v320, %v489
      %v491 = vpop.f32.mrb[0].mxu0
      %492 = vmatprep.mubr.f32.mxu0 0.0
      %493 = vmatmul.mubr.f32.gmra.mrb[0].mxu0 %v327
      %v494 = vpop.f32.mrb[0].mxu0
      %v495 = vadd.f32 %v320, %v494
      %v496 = vpop.f32.mrb[0].mxu0
      %497 = vmatprep.mubr.f32.mxu0 0.0
      %498 = vmatmul.mubr.f32.gmra.mrb[0].mxu0 %v330
      %v499 = vpop.f32.mrb[0].mxu0
      %v500 = vadd.f32 %v320, %v499
      %v501 = vpop.f32.mrb[0].mxu0
      %502 = vmatprep.mubr.f32.mxu0 0.0
      %503 = vmatmul.mubr.f32.gmra.mrb[0].mxu0 %v333
      %v504 = vpop.f32.mrb[0].mxu0
      %v505 = vadd.f32 %v320, %v504
      %v506 = vpop.f32.mrb[0].mxu0
      %507 = vmatprep.mubr.f32.mxu0 0.0
      %508 = vmatmul.mubr.f32.gmra.mrb[0].mxu0 %v336
      %v509 = vpop.f32.mrb[0].mxu0
      %v510 = vadd.f32 %v320, %v509
      %v511 = vpop.f32.mrb[0].mxu0
      %512 = vmatprep.mubr.f32.mxu0 0.0
      %513 = vmatmul.mubr.f32.gmra.mrb[0].mxu0 %v339
      %v514 = vpop.f32.mrb[0].mxu0
      %v515 = vadd.f32 %v320, %v514
      %v516 = vpop.f32.mrb[0].mxu0
      %517 = vmatprep.mubr.f32.mxu0 0.0
      %518 = vmatmul.mubr.f32.gmra.mrb[0].mxu0 %v342
      %v519 = vpop.f32.mrb[0].mxu0
      %v520 = vadd.f32 %v320, %v519
      %v521 = vpop.f32.mrb[0].mxu0
      %522 = vmatprep.mubr.f32.mxu0 0.0
      %523 = vmatmul.mubr.f32.gmra.mrb[0].mxu0 %v345
      %v524 = vpop.f32.mrb[0].mxu0
      %v525 = vadd.f32 %v320, %v524
      %v526 = vpop.f32.mrb[0].mxu0
      %527 = vmatprep.mubr.f32.mxu0 0.0
      %528 = vmatmul.mubr.f32.gmra.mrb[0].mxu0 %v348
      %v529 = vpop.f32.mrb[0].mxu0
      %v530 = vadd.f32 %v320, %v529
      %v531 = vpop.f32.mrb[0].mxu0
      %532 = vmatprep.mubr.f32.mxu0 0.0
      %533 = vmatmul.mubr.f32.gmra.mrb[0].mxu0 %v351
      %v534 = vpop.f32.mrb[0].mxu0
      %v535 = vadd.f32 %v320, %v534
      %v536 = vpop.f32.mrb[0].mxu0
      %537 = vmatprep.mubr.f32.mxu0 0.0
      %538 = vmatmul.mubr.f32.gmra.mrb[0].mxu0 %v354
      %v539 = vpop.f32.mrb[0].mxu0
      %v540 = vadd.f32 %v320, %v539
      %v541 = vpop.f32.mrb[0].mxu0
      %542 = vmatprep.mubr.f32.mxu0 0.0
      %543 = vmatmul.mubr.f32.gmra.mrb[0].mxu0 %v357
      %v544 = vpop.f32.mrb[0].mxu0
      %v545 = vadd.f32 %v320, %v544
      %v546 = vpop.f32.mrb[0].mxu0
      %547 = vmatprep.mubr.f32.mxu0 0.0
      %548 = vmatmul.mubr.f32.gmra.mrb[0].mxu0 %v360
      %v549 = vpop.f32.mrb[0].mxu0
      %v550 = vadd.f32 %v320, %v549
      %v551 = vpop.f32.mrb[0].mxu0
      %552 = vmatprep.mubr.f32.mxu0 0.0
      %553 = vmatmul.mubr.f32.gmra.mrb[0].mxu0 %v363
      %v554 = vpop.f32.mrb[0].mxu0
      %v555 = vadd.f32 %v320, %v554
      %v556 = vpop.f32.mrb[0].mxu0
      %557 = vmatprep.mubr.f32.mxu0 0.0
      %558 = vmatmul.mubr.f32.gmra.mrb[0].mxu0 %v366
      %v559 = vpop.f32.mrb[0].mxu0
      %v560 = vadd.f32 %v320, %v559
      %v561 = vpop.f32.mrb[0].mxu0
      %562 = vmatprep.mubr.f32.mxu0 0.0
      %563 = vmatmul.mubr.f32.gmra.mrb[0].mxu0 %v369
      %v564 = vpop.f32.mrb[0].mxu0
      %v565 = vadd.f32 %v320, %v564
      %v566 = vpop.f32.mrb[0].mxu0
      %567 = vmatprep.mubr.f32.mxu0 0.0
      %568 = vmatmul.mubr.f32.gmra.mrb[0].mxu0 %v372
      %v569 = vpop.f32.mrb[0].mxu0
      %v570 = vadd.f32 %v320, %v569
      %v571 = vpop.f32.mrb[0].mxu0
      %572 = vmatprep.mubr.f32.mxu0 0.0
      %573 = vmatmul.mubr.f32.gmra.mrb[0].mxu0 %v375
      %v574 = vpop.f32.mrb[0].mxu0
      %v575 = vadd.f32 %v320, %v574
      %v576 = vpop.f32.mrb[0].mxu0
      %577 = vmatprep.mubr.f32.mxu0 0.0
      %578 = vmatmul.mubr.f32.gmra.mrb[0].mxu0 %v378
      %v579 = vpop.f32.mrb[0].mxu0
      %v580 = vadd.f32 %v320, %v579
      %v581 = vpop.f32.mrb[0].mxu0
      %582 = vmatprep.mubr.f32.mxu0 0.0
      %583 = vmatmul.mubr.f32.gmra.mrb[0].mxu0 %v381
      %v584 = vpop.f32.mrb[0].mxu0
      %v585 = vadd.f32 %v320, %v584
      %v586 = vpop.f32.mrb[0].mxu0
      %587 = vmatprep.mubr.f32.mxu0 0.0
      %588 = vmatmul.mubr.f32.gmra.mrb[0].mxu0 %v384
      %v589 = vpop.f32.mrb[0].mxu0
      %v590 = vadd.f32 %v320, %v589
      %v591 = vpop.f32.mrb[0].mxu0
      %592 = vmatprep.mubr.f32.mxu0 0.0
      %593 = vmatmul.mubr.f32.gmra.mrb[0].mxu0 %v387
      %v594 = vpop.f32.mrb[0].mxu0
      %v595 = vadd.f32 %v320, %v594
      %v596 = vpop.f32.mrb[0].mxu0
      %597 = vmatprep.mubr.f32.mxu0 0.0
      %598 = vmatmul.mubr.f32.gmra.mrb[0].mxu0 %v390
      %v599 = vpop.f32.mrb[0].mxu0
      %v600 = vadd.f32 %v320, %v599
      %v601 = vpop.f32.mrb[0].mxu0
      %602 = vmatprep.mubr.f32.mxu0 0.0
      %603 = vmatmul.mubr.f32.gmra.mrb[0].mxu0 %v393
      %v604 = vpop.f32.mrb[0].mxu0
      %v605 = vadd.f32 %v320, %v604
      %v606 = vpop.f32.mrb[0].mxu0
      %607 = vmatprep.mubr.f32.mxu0 0.0
      %608 = vmatmul.mubr.f32.gmra.mrb[0].mxu0 %v396
      %v609 = vpop.f32.mrb[0].mxu0
      %v610 = vadd.f32 %v320, %v609
      %v611 = vpop.f32.mrb[0].mxu0
      %612 = vmatprep.mubr.f32.mxu0 0.0
      %613 = vmatmul.mubr.f32.gmra.mrb[0].mxu0 %v399
      %v614 = vpop.f32.mrb[0].mxu0
      %v615 = vadd.f32 %v320, %v614
      %v616 = vpop.f32.mrb[0].mxu0
      %617 = vmatprep.mubr.f32.mxu0 0.0
      %618 = vmatmul.mubr.f32.gmra.mrb[0].mxu0 %v402
      %v619 = vpop.f32.mrb[0].mxu0
      %v620 = vadd.f32 %v320, %v619
      %v621 = vpop.f32.mrb[0].mxu0
      %622 = vmatprep.mubr.f32.mxu0 0.0
      %623 = vmatmul.mubr.f32.gmra.mrb[0].mxu0 %v405
      %v624 = vpop.f32.mrb[0].mxu0
      %v625 = vadd.f32 %v320, %v624
      %v626 = vpop.f32.mrb[0].mxu0
      %627 = vmatprep.mubr.f32.mxu0 0.0
      %628 = vmatmul.mubr.f32.gmra.mrb[0].mxu0 %v408
      %v629 = vpop.f32.mrb[0].mxu0
      %v630 = vadd.f32 %v320, %v629
      %v631 = vpop.f32.mrb[0].mxu0
      %632 = vmatprep.mubr.f32.mxu0 0.0
      %633 = vmatmul.mubr.f32.gmra.mrb[0].mxu0 %v411
      %v634 = vpop.f32.mrb[0].mxu0
      %v635 = vadd.f32 %v320, %v634
      %v636 = vpop.f32.mrb[0].mxu0
      %637 = vmatprep.mubr.f32.mxu0 0.0
      %638 = vmatmul.mubr.f32.gmra.mrb[0].mxu0 %v414
      %v639 = vpop.f32.mrb[0].mxu0
      %v640 = vadd.f32 %v320, %v639
      %v641 = vpop.f32.mrb[0].mxu0
      %642 = vmatprep.mubr.f32.mxu0 0.0
      %643 = vmatmul.mubr.f32.gmra.mrb[0].mxu0 %v417
      %v644 = vpop.f32.mrb[0].mxu0
      %v645 = vadd.f32 %v320, %v644
      %v646 = vpop.f32.mrb[0].mxu0
      %647 = vdwg.mxu0
      %v648 = vmax.f32 %v490, 0.0
      %v649 = vmax.f32 %v495, 0.0
      %v650 = vmax.f32 %v500, 0.0
      %v651 = vmax.f32 %v505, 0.0
      %v652 = vmax.f32 %v510, 0.0
      %v653 = vmax.f32 %v515, 0.0
      %v654 = vmax.f32 %v520, 0.0
      %v655 = vmax.f32 %v525, 0.0
      %v656 = vmax.f32 %v530, 0.0
      %v657 = vmax.f32 %v535, 0.0
      %v658 = vmax.f32 %v540, 0.0
      %v659 = vmax.f32 %v545, 0.0
      %v660 = vmax.f32 %v550, 0.0
      %v661 = vmax.f32 %v555, 0.0
      %v662 = vmax.f32 %v560, 0.0
      %v663 = vmax.f32 %v565, 0.0
      %v664 = vmax.f32 %v570, 0.0
      %v665 = vmax.f32 %v575, 0.0
      %v666 = vmax.f32 %v580, 0.0
      %v667 = vmax.f32 %v585, 0.0
      %v668 = vmax.f32 %v590, 0.0
      %v669 = vmax.f32 %v595, 0.0
      %v670 = vmax.f32 %v600, 0.0
      %v671 = vmax.f32 %v605, 0.0
      %v672 = vmax.f32 %v610, 0.0
      %v673 = vmax.f32 %v615, 0.0
      %v674 = vmax.f32 %v620, 0.0
      %v675 = vmax.f32 %v625, 0.0
      %v676 = vmax.f32 %v630, 0.0
      %v677 = vmax.f32 %v635, 0.0
      %v678 = vmax.f32 %v640, 0.0
      %v679 = vmax.f32 %v645, 0.0
      %v680 = vld [vmem:[%s3] sm:$0xff]
      %v681 = vld [vmem:[%s3 + $0x8] sm:$0xff]
      %v682 = vld [vmem:[%s3 + $0x10] sm:$0xff]
      %v683 = vld [vmem:[%s3 + $0x18] sm:$0xff]
      %v684 = vld [vmem:[%s3 + $0x20] sm:$0xff]
      %v685 = vld [vmem:[%s3 + $0x28] sm:$0xff]
      %v686 = vld [vmem:[%s3 + $0x30] sm:$0xff]
      %v687 = vld [vmem:[%s3 + $0x38] sm:$0xff]
      %v688 = vld [vmem:[%s3 + $0x40] sm:$0xff]
      %v689 = vld [vmem:[%s3 + $0x48] sm:$0xff]
      %v690 = vld [vmem:[%s3 + $0x50] sm:$0xff]
      %v691 = vld [vmem:[%s3 + $0x58] sm:$0xff]
      %v692 = vld [vmem:[%s3 + $0x60] sm:$0xff]
      %v693 = vld [vmem:[%s3 + $0x68] sm:$0xff]
      %v694 = vld [vmem:[%s3 + $0x70] sm:$0xff]
      %v695 = vld [vmem:[%s3 + $0x78] sm:$0xff]
      %v696 = vld [vmem:[%s4] sm:$0x1]
      %v698 = vlaneseq
      %v699 = vshrl.u32 %v698, 7
      %v700 = vsub.s32 0, %v699
      %v701 = vrot.slane %v696, %v700
      %703 = vmatprep.subr.mxu0 0.0
      %704 = vmatpush1.msra.mxu0 %v680
      %705 = vmatprep.subr.mxu0 0.0
      %706 = vmatpush1.msra.mxu0 %v681
      %707 = vmatprep.subr.mxu0 0.0
      %708 = vmatpush1.msra.mxu0 %v682
      %709 = vmatprep.subr.mxu0 0.0
      %710 = vmatpush1.msra.mxu0 %v683
      %711 = vmatprep.subr.mxu0 0.0
      %712 = vmatpush1.msra.mxu0 %v684
      %713 = vmatprep.subr.mxu0 0.0
      %714 = vmatpush1.msra.mxu0 %v685
      %715 = vmatprep.subr.mxu0 0.0
      %716 = vmatpush1.msra.mxu0 %v686
      %717 = vmatprep.subr.mxu0 0.0
      %718 = vmatpush1.msra.mxu0 %v687
      %719 = vmatprep.subr.mxu0 0.0
      %720 = vmatpush1.msra.mxu0 %v688
      %721 = vmatprep.subr.mxu0 0.0
      %722 = vmatpush1.msra.mxu0 %v689
      %723 = vmatprep.subr.mxu0 0.0
      %724 = vmatpush1.msra.mxu0 %v690
      %725 = vmatprep.subr.mxu0 0.0
      %726 = vmatpush1.msra.mxu0 %v691
      %727 = vmatprep.subr.mxu0 0.0
      %728 = vmatpush1.msra.mxu0 %v692
      %729 = vmatprep.subr.mxu0 0.0
      %730 = vmatpush1.msra.mxu0 %v693
      %731 = vmatprep.subr.mxu0 0.0
      %732 = vmatpush1.msra.mxu0 %v694
      %733 = vmatprep.subr.mxu0 0.0
      %734 = vmatpush1.msra.mxu0 %v695
      %735 = vmatprep.subr.mxu0 0.0
      %736 = vmatpush1.msra.mxu0 0.0
      %737 = vmatprep.subr.mxu0 0.0
      %738 = vmatpush1.msra.mxu0 0.0
      %739 = vmatprep.subr.mxu0 0.0
      %740 = vmatpush1.msra.mxu0 0.0
      %741 = vmatprep.subr.mxu0 0.0
      %742 = vmatpush1.msra.mxu0 0.0
      %743 = vmatprep.subr.mxu0 0.0
      %744 = vmatpush1.msra.mxu0 0.0
      %745 = vmatprep.subr.mxu0 0.0
      %746 = vmatpush1.msra.mxu0 0.0
      %747 = vmatprep.subr.mxu0 0.0
      %748 = vmatpush1.msra.mxu0 0.0
      %749 = vmatprep.subr.mxu0 0.0
      %750 = vmatpush1.msra.mxu0 0.0
      %751 = vmatprep.subr.mxu0 0.0
      %752 = vmatpush1.msra.mxu0 0.0
      %753 = vmatprep.subr.mxu0 0.0
      %754 = vmatpush1.msra.mxu0 0.0
      %755 = vmatprep.subr.mxu0 0.0
      %756 = vmatpush1.msra.mxu0 0.0
      %757 = vmatprep.subr.mxu0 0.0
      %758 = vmatpush1.msra.mxu0 0.0
      %759 = vmatprep.subr.mxu0 0.0
      %760 = vmatpush1.msra.mxu0 0.0
      %761 = vmatprep.subr.mxu0 0.0
      %762 = vmatpush1.msra.mxu0 0.0
      %763 = vmatprep.subr.mxu0 0.0
      %764 = vmatpush1.msra.mxu0 0.0
      %765 = vmatprep.subr.mxu0 0.0
      %766 = vmatpush1.msra.mxu0 0.0
      %767 = vmatprep.mubr.f32.mxu0 0.0
      %768 = vmatmul.mubr.f32.gmra.mrb[0].mxu0 %v648
      %v769 = vpop.f32.mrb[0].mxu0
      %v770 = vadd.f32 %v701, %v769
      %v771 = vpop.f32.mrb[0].mxu0
      %772 = vmatprep.mubr.f32.mxu0 0.0
      %773 = vmatmul.mubr.f32.gmra.mrb[0].mxu0 %v649
      %v774 = vpop.f32.mrb[0].mxu0
      %v775 = vadd.f32 %v701, %v774
      %v776 = vpop.f32.mrb[0].mxu0
      %777 = vmatprep.mubr.f32.mxu0 0.0
      %778 = vmatmul.mubr.f32.gmra.mrb[0].mxu0 %v650
      %v779 = vpop.f32.mrb[0].mxu0
      %v780 = vadd.f32 %v701, %v779
      %v781 = vpop.f32.mrb[0].mxu0
      %782 = vmatprep.mubr.f32.mxu0 0.0
      %783 = vmatmul.mubr.f32.gmra.mrb[0].mxu0 %v651
      %v784 = vpop.f32.mrb[0].mxu0
      %v785 = vadd.f32 %v701, %v784
      %v786 = vpop.f32.mrb[0].mxu0
      %787 = vmatprep.mubr.f32.mxu0 0.0
      %788 = vmatmul.mubr.f32.gmra.mrb[0].mxu0 %v652
      %v789 = vpop.f32.mrb[0].mxu0
      %v790 = vadd.f32 %v701, %v789
      %v791 = vpop.f32.mrb[0].mxu0
      %792 = vmatprep.mubr.f32.mxu0 0.0
      %793 = vmatmul.mubr.f32.gmra.mrb[0].mxu0 %v653
      %v794 = vpop.f32.mrb[0].mxu0
      %v795 = vadd.f32 %v701, %v794
      %v796 = vpop.f32.mrb[0].mxu0
      %797 = vmatprep.mubr.f32.mxu0 0.0
      %798 = vmatmul.mubr.f32.gmra.mrb[0].mxu0 %v654
      %v799 = vpop.f32.mrb[0].mxu0
      %v800 = vadd.f32 %v701, %v799
      %v801 = vpop.f32.mrb[0].mxu0
      %802 = vmatprep.mubr.f32.mxu0 0.0
      %803 = vmatmul.mubr.f32.gmra.mrb[0].mxu0 %v655
      %v804 = vpop.f32.mrb[0].mxu0
      %v805 = vadd.f32 %v701, %v804
      %v806 = vpop.f32.mrb[0].mxu0
      %807 = vmatprep.mubr.f32.mxu0 0.0
      %808 = vmatmul.mubr.f32.gmra.mrb[0].mxu0 %v656
      %v809 = vpop.f32.mrb[0].mxu0
      %v810 = vadd.f32 %v701, %v809
      %v811 = vpop.f32.mrb[0].mxu0
      %812 = vmatprep.mubr.f32.mxu0 0.0
      %813 = vmatmul.mubr.f32.gmra.mrb[0].mxu0 %v657
      %v814 = vpop.f32.mrb[0].mxu0
      %v815 = vadd.f32 %v701, %v814
      %v816 = vpop.f32.mrb[0].mxu0
      %817 = vmatprep.mubr.f32.mxu0 0.0
      %818 = vmatmul.mubr.f32.gmra.mrb[0].mxu0 %v658
      %v819 = vpop.f32.mrb[0].mxu0
      %v820 = vadd.f32 %v701, %v819
      %v821 = vpop.f32.mrb[0].mxu0
      %822 = vmatprep.mubr.f32.mxu0 0.0
      %823 = vmatmul.mubr.f32.gmra.mrb[0].mxu0 %v659
      %v824 = vpop.f32.mrb[0].mxu0
      %v825 = vadd.f32 %v701, %v824
      %v826 = vpop.f32.mrb[0].mxu0
      %827 = vmatprep.mubr.f32.mxu0 0.0
      %828 = vmatmul.mubr.f32.gmra.mrb[0].mxu0 %v660
      %v829 = vpop.f32.mrb[0].mxu0
      %v830 = vadd.f32 %v701, %v829
      %v831 = vpop.f32.mrb[0].mxu0
      %832 = vmatprep.mubr.f32.mxu0 0.0
      %833 = vmatmul.mubr.f32.gmra.mrb[0].mxu0 %v661
      %v834 = vpop.f32.mrb[0].mxu0
      %v835 = vadd.f32 %v701, %v834
      %v836 = vpop.f32.mrb[0].mxu0
      %837 = vmatprep.mubr.f32.mxu0 0.0
      %838 = vmatmul.mubr.f32.gmra.mrb[0].mxu0 %v662
      %v839 = vpop.f32.mrb[0].mxu0
      %v840 = vadd.f32 %v701, %v839
      %v841 = vpop.f32.mrb[0].mxu0
      %842 = vmatprep.mubr.f32.mxu0 0.0
      %843 = vmatmul.mubr.f32.gmra.mrb[0].mxu0 %v663
      %v844 = vpop.f32.mrb[0].mxu0
      %v845 = vadd.f32 %v701, %v844
      %v846 = vpop.f32.mrb[0].mxu0
      %847 = vmatprep.mubr.f32.mxu0 0.0
      %848 = vmatmul.mubr.f32.gmra.mrb[0].mxu0 %v664
      %v849 = vpop.f32.mrb[0].mxu0
      %v850 = vadd.f32 %v701, %v849
      %v851 = vpop.f32.mrb[0].mxu0
      %852 = vmatprep.mubr.f32.mxu0 0.0
      %853 = vmatmul.mubr.f32.gmra.mrb[0].mxu0 %v665
      %v854 = vpop.f32.mrb[0].mxu0
      %v855 = vadd.f32 %v701, %v854
      %v856 = vpop.f32.mrb[0].mxu0
      %857 = vmatprep.mubr.f32.mxu0 0.0
      %858 = vmatmul.mubr.f32.gmra.mrb[0].mxu0 %v666
      %v859 = vpop.f32.mrb[0].mxu0
      %v860 = vadd.f32 %v701, %v859
      %v861 = vpop.f32.mrb[0].mxu0
      %862 = vmatprep.mubr.f32.mxu0 0.0
      %863 = vmatmul.mubr.f32.gmra.mrb[0].mxu0 %v667
      %v864 = vpop.f32.mrb[0].mxu0
      %v865 = vadd.f32 %v701, %v864
      %v866 = vpop.f32.mrb[0].mxu0
      %867 = vmatprep.mubr.f32.mxu0 0.0
      %868 = vmatmul.mubr.f32.gmra.mrb[0].mxu0 %v668
      %v869 = vpop.f32.mrb[0].mxu0
      %v870 = vadd.f32 %v701, %v869
      %v871 = vpop.f32.mrb[0].mxu0
      %872 = vmatprep.mubr.f32.mxu0 0.0
      %873 = vmatmul.mubr.f32.gmra.mrb[0].mxu0 %v669
      %v874 = vpop.f32.mrb[0].mxu0
      %v875 = vadd.f32 %v701, %v874
      %v876 = vpop.f32.mrb[0].mxu0
      %877 = vmatprep.mubr.f32.mxu0 0.0
      %878 = vmatmul.mubr.f32.gmra.mrb[0].mxu0 %v670
      %v879 = vpop.f32.mrb[0].mxu0
      %v880 = vadd.f32 %v701, %v879
      %v881 = vpop.f32.mrb[0].mxu0
      %882 = vmatprep.mubr.f32.mxu0 0.0
      %883 = vmatmul.mubr.f32.gmra.mrb[0].mxu0 %v671
      %v884 = vpop.f32.mrb[0].mxu0
      %v885 = vadd.f32 %v701, %v884
      %v886 = vpop.f32.mrb[0].mxu0
      %887 = vmatprep.mubr.f32.mxu0 0.0
      %888 = vmatmul.mubr.f32.gmra.mrb[0].mxu0 %v672
      %v889 = vpop.f32.mrb[0].mxu0
      %v890 = vadd.f32 %v701, %v889
      %v891 = vpop.f32.mrb[0].mxu0
      %892 = vmatprep.mubr.f32.mxu0 0.0
      %893 = vmatmul.mubr.f32.gmra.mrb[0].mxu0 %v673
      %v894 = vpop.f32.mrb[0].mxu0
      %v895 = vadd.f32 %v701, %v894
      %v896 = vpop.f32.mrb[0].mxu0
      %897 = vmatprep.mubr.f32.mxu0 0.0
      %898 = vmatmul.mubr.f32.gmra.mrb[0].mxu0 %v674
      %v899 = vpop.f32.mrb[0].mxu0
      %v900 = vadd.f32 %v701, %v899
      %v901 = vpop.f32.mrb[0].mxu0
      %902 = vmatprep.mubr.f32.mxu0 0.0
      %903 = vmatmul.mubr.f32.gmra.mrb[0].mxu0 %v675
      %v904 = vpop.f32.mrb[0].mxu0
      %v905 = vadd.f32 %v701, %v904
      %v906 = vpop.f32.mrb[0].mxu0
      %907 = vmatprep.mubr.f32.mxu0 0.0
      %908 = vmatmul.mubr.f32.gmra.mrb[0].mxu0 %v676
      %v909 = vpop.f32.mrb[0].mxu0
      %v910 = vadd.f32 %v701, %v909
      %v911 = vpop.f32.mrb[0].mxu0
      %912 = vmatprep.mubr.f32.mxu0 0.0
      %913 = vmatmul.mubr.f32.gmra.mrb[0].mxu0 %v677
      %v914 = vpop.f32.mrb[0].mxu0
      %v915 = vadd.f32 %v701, %v914
      %v916 = vpop.f32.mrb[0].mxu0
      %917 = vmatprep.mubr.f32.mxu0 0.0
      %918 = vmatmul.mubr.f32.gmra.mrb[0].mxu0 %v678
      %v919 = vpop.f32.mrb[0].mxu0
      %v920 = vadd.f32 %v701, %v919
      %v921 = vpop.f32.mrb[0].mxu0
      %922 = vmatprep.mubr.f32.mxu0 0.0
      %923 = vmatmul.mubr.f32.gmra.mrb[0].mxu0 %v679
      %v924 = vpop.f32.mrb[0].mxu0
      %v925 = vadd.f32 %v701, %v924
      %v926 = vpop.f32.mrb[0].mxu0
      %927 = vdwg.mxu0
      %v928 = vmax.f32 %v770, 0.0
      %v929 = vmax.f32 %v775, 0.0
      %v930 = vmax.f32 %v780, 0.0
      %v931 = vmax.f32 %v785, 0.0
      %v932 = vmax.f32 %v790, 0.0
      %v933 = vmax.f32 %v795, 0.0
      %v934 = vmax.f32 %v800, 0.0
      %v935 = vmax.f32 %v805, 0.0
      %v936 = vmax.f32 %v810, 0.0
      %v937 = vmax.f32 %v815, 0.0
      %v938 = vmax.f32 %v820, 0.0
      %v939 = vmax.f32 %v825, 0.0
      %v940 = vmax.f32 %v830, 0.0
      %v941 = vmax.f32 %v835, 0.0
      %v942 = vmax.f32 %v840, 0.0
      %v943 = vmax.f32 %v845, 0.0
      %v944 = vmax.f32 %v850, 0.0
      %v945 = vmax.f32 %v855, 0.0
      %v946 = vmax.f32 %v860, 0.0
      %v947 = vmax.f32 %v865, 0.0
      %v948 = vmax.f32 %v870, 0.0
      %v949 = vmax.f32 %v875, 0.0
      %v950 = vmax.f32 %v880, 0.0
      %v951 = vmax.f32 %v885, 0.0
      %v952 = vmax.f32 %v890, 0.0
      %v953 = vmax.f32 %v895, 0.0
      %v954 = vmax.f32 %v900, 0.0
      %v955 = vmax.f32 %v905, 0.0
      %v956 = vmax.f32 %v910, 0.0
      %v957 = vmax.f32 %v915, 0.0
      %v958 = vmax.f32 %v920, 0.0
      %v959 = vmax.f32 %v925, 0.0
      %v960 = vld [vmem:[%s5] sm:$0xff]
      %v961 = vld [vmem:[%s5 + $0x8] sm:$0xff]
      %v962 = vld [vmem:[%s5 + $0x10] sm:$0xff]
      %v963 = vld [vmem:[%s5 + $0x18] sm:$0xff]
      %v964 = vld [vmem:[%s5 + $0x20] sm:$0xff]
      %v965 = vld [vmem:[%s5 + $0x28] sm:$0xff]
      %v966 = vld [vmem:[%s5 + $0x30] sm:$0xff]
      %v967 = vld [vmem:[%s5 + $0x38] sm:$0xff]
      %v968 = vld [vmem:[%s5 + $0x40] sm:$0xff]
      %v969 = vld [vmem:[%s5 + $0x48] sm:$0xff]
      %v970 = vld [vmem:[%s5 + $0x50] sm:$0xff]
      %v971 = vld [vmem:[%s5 + $0x58] sm:$0xff]
      %v972 = vld [vmem:[%s5 + $0x60] sm:$0xff]
      %v973 = vld [vmem:[%s5 + $0x68] sm:$0xff]
      %v974 = vld [vmem:[%s5 + $0x70] sm:$0xff]
      %v975 = vld [vmem:[%s5 + $0x78] sm:$0xff]
      %v976 = vld [vmem:[%s6] sm:$0x1]
      %v978 = vlaneseq
      %v979 = vshrl.u32 %v978, 7
      %v980 = vsub.s32 0, %v979
      %v981 = vrot.slane %v976, %v980
      %983 = vmatprep.subr.mxu0 0.0
      %984 = vmatpush1.msra.mxu0 %v960
      %985 = vmatprep.subr.mxu0 0.0
      %986 = vmatpush1.msra.mxu0 %v961
      %987 = vmatprep.subr.mxu0 0.0
      %988 = vmatpush1.msra.mxu0 %v962
      %989 = vmatprep.subr.mxu0 0.0
      %990 = vmatpush1.msra.mxu0 %v963
      %991 = vmatprep.subr.mxu0 0.0
      %992 = vmatpush1.msra.mxu0 %v964
      %993 = vmatprep.subr.mxu0 0.0
      %994 = vmatpush1.msra.mxu0 %v965
      %995 = vmatprep.subr.mxu0 0.0
      %996 = vmatpush1.msra.mxu0 %v966
      %997 = vmatprep.subr.mxu0 0.0
      %998 = vmatpush1.msra.mxu0 %v967
      %999 = vmatprep.subr.mxu0 0.0
      %1000 = vmatpush1.msra.mxu0 %v968
      %1001 = vmatprep.subr.mxu0 0.0
      %1002 = vmatpush1.msra.mxu0 %v969
      %1003 = vmatprep.subr.mxu0 0.0
      %1004 = vmatpush1.msra.mxu0 %v970
      %1005 = vmatprep.subr.mxu0 0.0
      %1006 = vmatpush1.msra.mxu0 %v971
      %1007 = vmatprep.subr.mxu0 0.0
      %1008 = vmatpush1.msra.mxu0 %v972
      %1009 = vmatprep.subr.mxu0 0.0
      %1010 = vmatpush1.msra.mxu0 %v973
      %1011 = vmatprep.subr.mxu0 0.0
      %1012 = vmatpush1.msra.mxu0 %v974
      %1013 = vmatprep.subr.mxu0 0.0
      %1014 = vmatpush1.msra.mxu0 %v975
      %1015 = vmatprep.subr.mxu0 0.0
      %1016 = vmatpush1.msra.mxu0 0.0
      %1017 = vmatprep.subr.mxu0 0.0
      %1018 = vmatpush1.msra.mxu0 0.0
      %1019 = vmatprep.subr.mxu0 0.0
      %1020 = vmatpush1.msra.mxu0 0.0
      %1021 = vmatprep.subr.mxu0 0.0
      %1022 = vmatpush1.msra.mxu0 0.0
      %1023 = vmatprep.subr.mxu0 0.0
      %1024 = vmatpush1.msra.mxu0 0.0
      %1025 = vmatprep.subr.mxu0 0.0
      %1026 = vmatpush1.msra.mxu0 0.0
      %1027 = vmatprep.subr.mxu0 0.0
      %1028 = vmatpush1.msra.mxu0 0.0
      %1029 = vmatprep.subr.mxu0 0.0
      %1030 = vmatpush1.msra.mxu0 0.0
      %1031 = vmatprep.subr.mxu0 0.0
      %1032 = vmatpush1.msra.mxu0 0.0
      %1033 = vmatprep.subr.mxu0 0.0
      %1034 = vmatpush1.msra.mxu0 0.0
      %1035 = vmatprep.subr.mxu0 0.0
      %1036 = vmatpush1.msra.mxu0 0.0
      %1037 = vmatprep.subr.mxu0 0.0
      %1038 = vmatpush1.msra.mxu0 0.0
      %1039 = vmatprep.subr.mxu0 0.0
      %1040 = vmatpush1.msra.mxu0 0.0
      %1041 = vmatprep.subr.mxu0 0.0
      %1042 = vmatpush1.msra.mxu0 0.0
      %1043 = vmatprep.subr.mxu0 0.0
      %1044 = vmatpush1.msra.mxu0 0.0
      %1045 = vmatprep.subr.mxu0 0.0
      %1046 = vmatpush1.msra.mxu0 0.0
      %1047 = vmatprep.mubr.f32.mxu0 0.0
      %1048 = vmatmul.mubr.f32.gmra.mrb[0].mxu0 %v928
      %v1049 = vpop.f32.mrb[0].mxu0
      %v1050 = vadd.f32 %v981, %v1049
      %v1051 = vpop.f32.mrb[0].mxu0
      %1052 = vmatprep.mubr.f32.mxu0 0.0
      %1053 = vmatmul.mubr.f32.gmra.mrb[0].mxu0 %v929
      %v1054 = vpop.f32.mrb[0].mxu0
      %v1055 = vadd.f32 %v981, %v1054
      %v1056 = vpop.f32.mrb[0].mxu0
      %1057 = vmatprep.mubr.f32.mxu0 0.0
      %1058 = vmatmul.mubr.f32.gmra.mrb[0].mxu0 %v930
      %v1059 = vpop.f32.mrb[0].mxu0
      %v1060 = vadd.f32 %v981, %v1059
      %v1061 = vpop.f32.mrb[0].mxu0
      %1062 = vmatprep.mubr.f32.mxu0 0.0
      %1063 = vmatmul.mubr.f32.gmra.mrb[0].mxu0 %v931
      %v1064 = vpop.f32.mrb[0].mxu0
      %v1065 = vadd.f32 %v981, %v1064
      %v1066 = vpop.f32.mrb[0].mxu0
      %1067 = vmatprep.mubr.f32.mxu0 0.0
      %1068 = vmatmul.mubr.f32.gmra.mrb[0].mxu0 %v932
      %v1069 = vpop.f32.mrb[0].mxu0
      %v1070 = vadd.f32 %v981, %v1069
      %v1071 = vpop.f32.mrb[0].mxu0
      %1072 = vmatprep.mubr.f32.mxu0 0.0
      %1073 = vmatmul.mubr.f32.gmra.mrb[0].mxu0 %v933
      %v1074 = vpop.f32.mrb[0].mxu0
      %v1075 = vadd.f32 %v981, %v1074
      %v1076 = vpop.f32.mrb[0].mxu0
      %1077 = vmatprep.mubr.f32.mxu0 0.0
      %1078 = vmatmul.mubr.f32.gmra.mrb[0].mxu0 %v934
      %v1079 = vpop.f32.mrb[0].mxu0
      %v1080 = vadd.f32 %v981, %v1079
      %v1081 = vpop.f32.mrb[0].mxu0
      %1082 = vmatprep.mubr.f32.mxu0 0.0
      %1083 = vmatmul.mubr.f32.gmra.mrb[0].mxu0 %v935
      %v1084 = vpop.f32.mrb[0].mxu0
      %v1085 = vadd.f32 %v981, %v1084
      %v1086 = vpop.f32.mrb[0].mxu0
      %1087 = vmatprep.mubr.f32.mxu0 0.0
      %1088 = vmatmul.mubr.f32.gmra.mrb[0].mxu0 %v936
      %v1089 = vpop.f32.mrb[0].mxu0
      %v1090 = vadd.f32 %v981, %v1089
      %v1091 = vpop.f32.mrb[0].mxu0
      %1092 = vmatprep.mubr.f32.mxu0 0.0
      %1093 = vmatmul.mubr.f32.gmra.mrb[0].mxu0 %v937
      %v1094 = vpop.f32.mrb[0].mxu0
      %v1095 = vadd.f32 %v981, %v1094
      %v1096 = vpop.f32.mrb[0].mxu0
      %1097 = vmatprep.mubr.f32.mxu0 0.0
      %1098 = vmatmul.mubr.f32.gmra.mrb[0].mxu0 %v938
      %v1099 = vpop.f32.mrb[0].mxu0
      %v1100 = vadd.f32 %v981, %v1099
      %v1101 = vpop.f32.mrb[0].mxu0
      %1102 = vmatprep.mubr.f32.mxu0 0.0
      %1103 = vmatmul.mubr.f32.gmra.mrb[0].mxu0 %v939
      %v1104 = vpop.f32.mrb[0].mxu0
      %v1105 = vadd.f32 %v981, %v1104
      %v1106 = vpop.f32.mrb[0].mxu0
      %1107 = vmatprep.mubr.f32.mxu0 0.0
      %1108 = vmatmul.mubr.f32.gmra.mrb[0].mxu0 %v940
      %v1109 = vpop.f32.mrb[0].mxu0
      %v1110 = vadd.f32 %v981, %v1109
      %v1111 = vpop.f32.mrb[0].mxu0
      %1112 = vmatprep.mubr.f32.mxu0 0.0
      %1113 = vmatmul.mubr.f32.gmra.mrb[0].mxu0 %v941
      %v1114 = vpop.f32.mrb[0].mxu0
      %v1115 = vadd.f32 %v981, %v1114
      %v1116 = vpop.f32.mrb[0].mxu0
      %1117 = vmatprep.mubr.f32.mxu0 0.0
      %1118 = vmatmul.mubr.f32.gmra.mrb[0].mxu0 %v942
      %v1119 = vpop.f32.mrb[0].mxu0
      %v1120 = vadd.f32 %v981, %v1119
      %v1121 = vpop.f32.mrb[0].mxu0
      %1122 = vmatprep.mubr.f32.mxu0 0.0
      %1123 = vmatmul.mubr.f32.gmra.mrb[0].mxu0 %v943
      %v1124 = vpop.f32.mrb[0].mxu0
      %v1125 = vadd.f32 %v981, %v1124
      %v1126 = vpop.f32.mrb[0].mxu0
      %1127 = vmatprep.mubr.f32.mxu0 0.0
      %1128 = vmatmul.mubr.f32.gmra.mrb[0].mxu0 %v944
      %v1129 = vpop.f32.mrb[0].mxu0
      %v1130 = vadd.f32 %v981, %v1129
      %v1131 = vpop.f32.mrb[0].mxu0
      %1132 = vmatprep.mubr.f32.mxu0 0.0
      %1133 = vmatmul.mubr.f32.gmra.mrb[0].mxu0 %v945
      %v1134 = vpop.f32.mrb[0].mxu0
      %v1135 = vadd.f32 %v981, %v1134
      %v1136 = vpop.f32.mrb[0].mxu0
      %1137 = vmatprep.mubr.f32.mxu0 0.0
      %1138 = vmatmul.mubr.f32.gmra.mrb[0].mxu0 %v946
      %v1139 = vpop.f32.mrb[0].mxu0
      %v1140 = vadd.f32 %v981, %v1139
      %v1141 = vpop.f32.mrb[0].mxu0
      %1142 = vmatprep.mubr.f32.mxu0 0.0
      %1143 = vmatmul.mubr.f32.gmra.mrb[0].mxu0 %v947
      %v1144 = vpop.f32.mrb[0].mxu0
      %v1145 = vadd.f32 %v981, %v1144
      %v1146 = vpop.f32.mrb[0].mxu0
      %1147 = vmatprep.mubr.f32.mxu0 0.0
      %1148 = vmatmul.mubr.f32.gmra.mrb[0].mxu0 %v948
      %v1149 = vpop.f32.mrb[0].mxu0
      %v1150 = vadd.f32 %v981, %v1149
      %v1151 = vpop.f32.mrb[0].mxu0
      %1152 = vmatprep.mubr.f32.mxu0 0.0
      %1153 = vmatmul.mubr.f32.gmra.mrb[0].mxu0 %v949
      %v1154 = vpop.f32.mrb[0].mxu0
      %v1155 = vadd.f32 %v981, %v1154
      %v1156 = vpop.f32.mrb[0].mxu0
      %1157 = vmatprep.mubr.f32.mxu0 0.0
      %1158 = vmatmul.mubr.f32.gmra.mrb[0].mxu0 %v950
      %v1159 = vpop.f32.mrb[0].mxu0
      %v1160 = vadd.f32 %v981, %v1159
      %v1161 = vpop.f32.mrb[0].mxu0
      %1162 = vmatprep.mubr.f32.mxu0 0.0
      %1163 = vmatmul.mubr.f32.gmra.mrb[0].mxu0 %v951
      %v1164 = vpop.f32.mrb[0].mxu0
      %v1165 = vadd.f32 %v981, %v1164
      %v1166 = vpop.f32.mrb[0].mxu0
      %1167 = vmatprep.mubr.f32.mxu0 0.0
      %1168 = vmatmul.mubr.f32.gmra.mrb[0].mxu0 %v952
      %v1169 = vpop.f32.mrb[0].mxu0
      %v1170 = vadd.f32 %v981, %v1169
      %v1171 = vpop.f32.mrb[0].mxu0
      %1172 = vmatprep.mubr.f32.mxu0 0.0
      %1173 = vmatmul.mubr.f32.gmra.mrb[0].mxu0 %v953
      %v1174 = vpop.f32.mrb[0].mxu0
      %v1175 = vadd.f32 %v981, %v1174
      %v1176 = vpop.f32.mrb[0].mxu0
      %1177 = vmatprep.mubr.f32.mxu0 0.0
      %1178 = vmatmul.mubr.f32.gmra.mrb[0].mxu0 %v954
      %v1179 = vpop.f32.mrb[0].mxu0
      %v1180 = vadd.f32 %v981, %v1179
      %v1181 = vpop.f32.mrb[0].mxu0
      %1182 = vmatprep.mubr.f32.mxu0 0.0
      %1183 = vmatmul.mubr.f32.gmra.mrb[0].mxu0 %v955
      %v1184 = vpop.f32.mrb[0].mxu0
      %v1185 = vadd.f32 %v981, %v1184
      %v1186 = vpop.f32.mrb[0].mxu0
      %1187 = vmatprep.mubr.f32.mxu0 0.0
      %1188 = vmatmul.mubr.f32.gmra.mrb[0].mxu0 %v956
      %v1189 = vpop.f32.mrb[0].mxu0
      %v1190 = vadd.f32 %v981, %v1189
      %v1191 = vpop.f32.mrb[0].mxu0
      %1192 = vmatprep.mubr.f32.mxu0 0.0
      %1193 = vmatmul.mubr.f32.gmra.mrb[0].mxu0 %v957
      %v1194 = vpop.f32.mrb[0].mxu0
      %v1195 = vadd.f32 %v981, %v1194
      %v1196 = vpop.f32.mrb[0].mxu0
      %1197 = vmatprep.mubr.f32.mxu0 0.0
      %1198 = vmatmul.mubr.f32.gmra.mrb[0].mxu0 %v958
      %v1199 = vpop.f32.mrb[0].mxu0
      %v1200 = vadd.f32 %v981, %v1199
      %v1201 = vpop.f32.mrb[0].mxu0
      %1202 = vmatprep.mubr.f32.mxu0 0.0
      %1203 = vmatmul.mubr.f32.gmra.mrb[0].mxu0 %v959
      %v1204 = vpop.f32.mrb[0].mxu0
      %v1205 = vadd.f32 %v981, %v1204
      %v1206 = vpop.f32.mrb[0].mxu0
      %1207 = vdwg.mxu0
      %vm1208 = vcmask 23552
      %1209 = vst.msk [vmem:[%s280] sm:$0xff] %vm1208, %v1050
      %1210 = vst.msk [vmem:[%s280 + $0x8] sm:$0xff] %vm1208, %v1055
      %1211 = vst.msk [vmem:[%s280 + $0x10] sm:$0xff] %vm1208, %v1060
      %1212 = vst.msk [vmem:[%s280 + $0x18] sm:$0xff] %vm1208, %v1065
      %1213 = vst.msk [vmem:[%s280 + $0x20] sm:$0xff] %vm1208, %v1070
      %1214 = vst.msk [vmem:[%s280 + $0x28] sm:$0xff] %vm1208, %v1075
      %1215 = vst.msk [vmem:[%s280 + $0x30] sm:$0xff] %vm1208, %v1080
      %1216 = vst.msk [vmem:[%s280 + $0x38] sm:$0xff] %vm1208, %v1085
      %1217 = vst.msk [vmem:[%s280 + $0x40] sm:$0xff] %vm1208, %v1090
      %1218 = vst.msk [vmem:[%s280 + $0x48] sm:$0xff] %vm1208, %v1095
      %1219 = vst.msk [vmem:[%s280 + $0x50] sm:$0xff] %vm1208, %v1100
      %1220 = vst.msk [vmem:[%s280 + $0x58] sm:$0xff] %vm1208, %v1105
      %1221 = vst.msk [vmem:[%s280 + $0x60] sm:$0xff] %vm1208, %v1110
      %1222 = vst.msk [vmem:[%s280 + $0x68] sm:$0xff] %vm1208, %v1115
      %1223 = vst.msk [vmem:[%s280 + $0x70] sm:$0xff] %vm1208, %v1120
      %1224 = vst.msk [vmem:[%s280 + $0x78] sm:$0xff] %vm1208, %v1125
      %1225 = vst.msk [vmem:[%s280 + $0x80] sm:$0xff] %vm1208, %v1130
      %1226 = vst.msk [vmem:[%s280 + $0x88] sm:$0xff] %vm1208, %v1135
      %1227 = vst.msk [vmem:[%s280 + $0x90] sm:$0xff] %vm1208, %v1140
      %1228 = vst.msk [vmem:[%s280 + $0x98] sm:$0xff] %vm1208, %v1145
      %1229 = vst.msk [vmem:[%s280 + $0xa0] sm:$0xff] %vm1208, %v1150
      %1230 = vst.msk [vmem:[%s280 + $0xa8] sm:$0xff] %vm1208, %v1155
      %1231 = vst.msk [vmem:[%s280 + $0xb0] sm:$0xff] %vm1208, %v1160
      %1232 = vst.msk [vmem:[%s280 + $0xb8] sm:$0xff] %vm1208, %v1165
      %1233 = vst.msk [vmem:[%s280 + $0xc0] sm:$0xff] %vm1208, %v1170
      %1234 = vst.msk [vmem:[%s280 + $0xc8] sm:$0xff] %vm1208, %v1175
      %1235 = vst.msk [vmem:[%s280 + $0xd0] sm:$0xff] %vm1208, %v1180
      %1236 = vst.msk [vmem:[%s280 + $0xd8] sm:$0xff] %vm1208, %v1185
      %1237 = vst.msk [vmem:[%s280 + $0xe0] sm:$0xff] %vm1208, %v1190
      %1238 = vst.msk [vmem:[%s280 + $0xe8] sm:$0xff] %vm1208, %v1195
      %1239 = vst.msk [vmem:[%s280 + $0xf0] sm:$0xff] %vm1208, %v1200
      %1240 = vst.msk [vmem:[%s280 + $0xf8] sm:$0xff] %vm1208, %v1205
      %s1241 = smul.u32 32, %s18
      %p1242 = scmp.lt.s32.totalorder %s1241, 63
      %s1243 = scalar_select %p1242, %s1241, 63
      %s1244 = smul.addr %s1243, 8
      %s1245 = scalar_lea.vmem %s7, %s1244
      // Predicated region
      $region49: #{classification_model_forward.1} parent=47 // pred_check
        %p1246 = pneg %p188
      $region50: #{classification_model_forward.1} parent=47 // pred_check_branch
        %1248 = sbr.rel (%p1246) target = $region52
      $region51: #{classification_model_forward.1} parent=47 // pred_region
        %s1249 = smul.u32 32, %s18
      $region52: #{classification_model_forward.1} parent=47 // pred_fallthru
        _
    $region48: #{classification_model_forward.1} parent=5 // pred_fallthru
      _
    %p1250 = scmp.le.s32.totalorder 2, %s13
    // Predicated region
    $region53: #{classification_model_forward.1} parent=5 // pred_check
      %p1251 = pneg %p1250
    $region54: #{classification_model_forward.1} parent=5 // pred_check_branch
      %1253 = sbr.rel (%p1251) target = $region56
    $region55: #{classification_model_forward.1} parent=5 // pred_region
      %s1254 = ssub.s32 %s13, 2
      // Predicated region
      $region57: #{classification_model_forward.1} parent=55 // pred_check
        %p1255 = pneg %p194
      $region58: #{classification_model_forward.1} parent=55 // pred_check_branch
        %1257 = sbr.rel (%p1255) target = $region60
      $region59: #{classification_model_forward.1} parent=55 // pred_region
        %s1258 = smul.u32 32, %s19
        %p1259 = scmp.lt.s32.totalorder %s1258, 63
        %s1260 = scalar_select %p1259, %s1258, 63
        %s1261 = smul.addr %s1260, 8
        %s1262 = scalar_lea.vmem %s7, %s1261
      $region60: #{classification_model_forward.1} parent=55 // pred_fallthru
        _
    $region56: #{classification_model_forward.1} parent=5 // pred_fallthru
      _
  $region6: #{classification_model_forward.1} parent=0 // loop_footer
    %s17 = sadd.s32 1, %s13
  $region7: #{classification_model_forward.1} parent=0 // loop_footer_branch
    %12 = sbr.rel target = $region3
  $region8: #{classification_model_forward.1} parent=0 // loop_exit
    _

</llo_original>
